<compile_context>
chip_gen: v7x
topology: tpu7x:2x2x1
jax: 0.10.0
libtpu: 0.0.40
codegen_flags: <defaults>
</compile_context>

<pallas_src>
import functools

import jax
import jax.numpy as jnp
from jax import lax
from jax.experimental import pallas as pl
from jax.experimental.pallas import tpu as pltpu


def _sigmoid(x):
    return 1.0 / (1.0 + jnp.exp(-x))


# ---------------------------------------------------------------------------
# Kernel 1: single-layer LSTM recurrence over all timesteps.
# ---------------------------------------------------------------------------
def _lstm_kernel(x_ref, wih_ref, whh_ref, b_ref, hs_ref, h_sc, c_sc):
    # x_ref:  (L, N, F) time-major input
    # wih_ref:(F, 4H)   weight_ih^T      whh_ref:(H, 4H) weight_hh^T
    # b_ref:  (1, 4H)   b_ih + b_hh
    # hs_ref: (L, N, H) all hidden states (H=128 -> lane-dense stores)
    # h_sc, c_sc: (N, H) f32 scratch (hidden / cell state)
    hdim = h_sc.shape[-1]
    seq_len = x_ref.shape[0]
    h_sc[...] = jnp.zeros_like(h_sc)
    c_sc[...] = jnp.zeros_like(c_sc)

    def step(t, carry):
        xt = x_ref[t]                                              # (N, F)
        gates = (
            jnp.dot(xt, wih_ref[...], preferred_element_type=jnp.float32)
            + jnp.dot(h_sc[...], whh_ref[...],
                      preferred_element_type=jnp.float32)
            + b_ref[...]
        )                                                          # (N, 4H)
        i = _sigmoid(gates[:, 0 * hdim:1 * hdim])                  # PyTorch gate
        f = _sigmoid(gates[:, 1 * hdim:2 * hdim])                  # order: i,f,g,o
        g = jnp.tanh(gates[:, 2 * hdim:3 * hdim])
        o = _sigmoid(gates[:, 3 * hdim:4 * hdim])
        c = f * c_sc[...] + i * g
        h = o * jnp.tanh(c)
        c_sc[...] = c
        h_sc[...] = h
        hs_ref[t] = h                                              # (N, H)
        return carry

    lax.fori_loop(0, seq_len, step, 0)


# ---------------------------------------------------------------------------
# Kernel 2: fused conv/BN/ReLU/SE stack + time-mean + fc head.
# ---------------------------------------------------------------------------
def _conv_se_head_kernel(x_ref, x1_ref,
                         w1_ref, b1_ref, se1a_ref, se1b_ref,
                         w2_ref, b2_ref, se2a_ref, se2b_ref,
                         w3_ref, b3_ref,
                         wfc_lstm_ref, wfc_conv_ref, bfc_ref,
                         o_ref, *, k1, k2, k3):
    # x_ref : (N, L, F) channels-last input (no NCL transpose needed)
    # x1_ref: (N, H)    LSTM feature
    # w*_ref: (K, Cin, Cout) BN-folded conv weights; b*_ref: (1, Cout)
    # se*a  : (C, C//r); se*b: (C//r, C)
    # wfc_* : (H,1) / (C3,1); bfc: (1,1); o_ref: (N, 1)

    def conv_relu(h, w_ref_, b_ref_, k):
        # 'valid' conv, stride 1; K taps accumulated in one f32 accumulator.
        lout = h.shape[0] - k + 1
        cout = w_ref_.shape[-1]
        acc = jnp.zeros((lout, cout), jnp.float32)
        for t in range(k):                        # static unroll (K in {8,5,3})
            acc = acc + jnp.dot(h[t:t + lout, :], w_ref_[t],
                                preferred_element_type=jnp.float32)
        return jnp.maximum(acc + b_ref_[...], 0.0)  # BN folded; dropout = id

    def se(h, wa_ref, wb_ref):
        p = jnp.mean(h, axis=0, keepdims=True)                     # (1, C)
        z = jnp.maximum(
            jnp.dot(p, wa_ref[...], preferred_element_type=jnp.float32), 0.0)
        s = _sigmoid(
            jnp.dot(z, wb_ref[...], preferred_element_type=jnp.float32))
        return h * s

    x_all = x_ref[...]                                             # (N, L, F)
    x1_all = x1_ref[...]                                           # (N, H)
    n = x_all.shape[0]

    for b in range(n):                            # static unroll (tiny batch)
        y = conv_relu(x_all[b], w1_ref, b1_ref, k1)                # (L1, C1)
        y = se(y, se1a_ref, se1b_ref)
        y = conv_relu(y, w2_ref, b2_ref, k2)                       # (L2, C2)
        y = se(y, se2a_ref, se2b_ref)
        y = conv_relu(y, w3_ref, b3_ref, k3)                       # (L3, C3)
        x2b = jnp.mean(y, axis=0, keepdims=True)                   # (1, C3)
        x1b = x1_all[b:b + 1, :]                                   # (1, H)
        out_b = (jnp.dot(x1b, wfc_lstm_ref[...],
                         preferred_element_type=jnp.float32)
                 + jnp.dot(x2b, wfc_conv_ref[...],
                           preferred_element_type=jnp.float32)
                 + bfc_ref[...])                                   # (1, 1)
        o_ref[b:b + 1, :] = out_b


# ---------------------------------------------------------------------------
# Wrapper
# ---------------------------------------------------------------------------
def _vmem_specs(n):
    return [pl.BlockSpec(memory_space=pltpu.MemorySpace.VMEM) for _ in range(n)]


def regression_mlstm_fcn_forward(x, seq_lens, params):
    """Inference forward of RegressionMLSTMfcn.

    x:        (N, L, F) float32, batch-first (same layout as the PyTorch model)
    seq_lens: (N,) int32 valid lengths (pack_padded_sequence semantics)
    returns:  (N,) float32
    """
    n, l, f = x.shape
    h = params["lstm_w_hh"].shape[1]

    # ---- LSTM branch -------------------------------------------------------
    wih_t = jnp.transpose(params["lstm_w_ih"])                    # (F, 4H)
    whh_t = jnp.transpose(params["lstm_w_hh"])                    # (H, 4H)
    b_lstm = (params["lstm_b_ih"] + params["lstm_b_hh"]).reshape(1, 4 * h)
    x_tm = jnp.transpose(x, (1, 0, 2))                            # (L, N, F)

    hs = pl.pallas_call(
        _lstm_kernel,
        out_shape=jax.ShapeDtypeStruct((l, n, h), jnp.float32),
        in_specs=_vmem_specs(4),
        out_specs=pl.BlockSpec(memory_space=pltpu.MemorySpace.VMEM),
        scratch_shapes=[pltpu.VMEM((n, h), jnp.float32),
                        pltpu.VMEM((n, h), jnp.float32)],
    )(x_tm, wih_t, whh_t, b_lstm)

    # pack_padded_sequence -> LSTM -> pad_packed_sequence -> x1[:, -1, :]:
    # padded output has length max(seq_lens); its last step is the real LSTM
    # output only for max-length sequences, else the 0.0 padding value.
    t_max = jnp.max(seq_lens)
    h_last = jnp.take(hs, t_max - 1, axis=0)                      # (N, H)
    x1 = jnp.where((seq_lens == t_max)[:, None], h_last, 0.0)

    # ---- fold eval-mode BatchNorm into the conv weights (wrapper, tiny) ----
    def fold_conv_bn(w, b, gamma, beta, mean, var, eps=1e-5):
        s = gamma / jnp.sqrt(var + eps)                           # (Cout,)
        w_f = w * s[:, None, None]                                # (Cout,Cin,K)
        b_f = b * s + beta - mean * s                             # (Cout,)
        return jnp.transpose(w_f, (2, 1, 0)), b_f.reshape(1, -1)  # (K,Cin,Cout)

    w1, b1 = fold_conv_bn(params["conv1_w"], params["conv1_b"],
                          params["bn1_gamma"], params["bn1_beta"],
                          params["bn1_mean"], params["bn1_var"])
    w2, b2 = fold_conv_bn(params["conv2_w"], params["conv2_b"],
                          params["bn2_gamma"], params["bn2_beta"],
                          params["bn2_mean"], params["bn2_var"])
    w3, b3 = fold_conv_bn(params["conv3_w"], params["conv3_b"],
                          params["bn3_gamma"], params["bn3_beta"],
                          params["bn3_mean"], params["bn3_var"])

    se1a = jnp.transpose(params["se1_w1"])                        # (C1, C1//16)
    se1b = jnp.transpose(params["se1_w2"])                        # (C1//16, C1)
    se2a = jnp.transpose(params["se2_w1"])
    se2b = jnp.transpose(params["se2_w2"])

    wfc_lstm = jnp.transpose(params["fc_w"][:, :h])               # (H, 1)
    wfc_conv = jnp.transpose(params["fc_w"][:, h:])               # (C3, 1)
    bfc = params["fc_b"].reshape(1, 1)

    kernel = functools.partial(
        _conv_se_head_kernel,
        k1=params["conv1_w"].shape[-1],
        k2=params["conv2_w"].shape[-1],
        k3=params["conv3_w"].shape[-1])

    out = pl.pallas_call(
        kernel,
        out_shape=jax.ShapeDtypeStruct((n, 1), jnp.float32),
        in_specs=_vmem_specs(15),
        out_specs=pl.BlockSpec(memory_space=pltpu.MemorySpace.VMEM),
    )(x, x1, w1, b1, se1a, se1b, w2, b2, se2a, se2b, w3, b3,
      wfc_lstm, wfc_conv, bfc)

    return out[:, 0]


# ---------------------------------------------------------------------------
# Pure-JAX reference (eval-mode PyTorch semantics) and parameter init
# ---------------------------------------------------------------------------
def reference_forward(x, seq_lens, p):
    hp = lax.Precision.HIGHEST
    n, l, f = x.shape
    hdim = p["lstm_w_hh"].shape[1]

    wih, whh = p["lstm_w_ih"], p["lstm_w_hh"]
    b_sum = p["lstm_b_ih"] + p["lstm_b_hh"]

    def step(carry, xt):
        h, c = carry
        gates = (jnp.dot(xt, wih.T, precision=hp)
                 + jnp.dot(h, whh.T, precision=hp) + b_sum)
        i, fg, g, o = jnp.split(gates, 4, axis=-1)
        c = jax.nn.sigmoid(fg) * c + jax.nn.sigmoid(i) * jnp.tanh(g)
        h = jax.nn.sigmoid(o) * jnp.tanh(c)
        return (h, c), h

    h0 = jnp.zeros((n, hdim), jnp.float32)
    _, hs = lax.scan(step, (h0, h0), jnp.swapaxes(x, 0, 1))
    t_max = jnp.max(seq_lens)
    h_last = jnp.take(hs, t_max - 1, axis=0)
    x1 = jnp.where((seq_lens == t_max)[:, None], h_last, 0.0)

    xc = jnp.swapaxes(x, 1, 2)                                    # (N, F, L)

    def conv_bn_relu(h, w, b, gamma, beta, mean, var, eps=1e-5):
        y = lax.conv_general_dilated(
            h, w, (1,), "VALID",
            dimension_numbers=("NCH", "OIH", "NCH"), precision=hp)
        y = y + b[None, :, None]
        y = (y - mean[None, :, None]) / jnp.sqrt(var[None, :, None] + eps)
        y = y * gamma[None, :, None] + beta[None, :, None]
        return jnp.maximum(y, 0.0)

    def se(h, w1, w2):
        pool = jnp.mean(h, axis=2)
        z = jnp.maximum(jnp.dot(pool, w1.T, precision=hp), 0.0)
        s = jax.nn.sigmoid(jnp.dot(z, w2.T, precision=hp))
        return h * s[:, :, None]

    y = conv_bn_relu(xc, p["conv1_w"], p["conv1_b"], p["bn1_gamma"],
                     p["bn1_beta"], p["bn1_mean"], p["bn1_var"])
    y = se(y, p["se1_w1"], p["se1_w2"])
    y = conv_bn_relu(y, p["conv2_w"], p["conv2_b"], p["bn2_gamma"],
                     p["bn2_beta"], p["bn2_mean"], p["bn2_var"])
    y = se(y, p["se2_w1"], p["se2_w2"])
    y = conv_bn_relu(y, p["conv3_w"], p["conv3_b"], p["bn3_gamma"],
                     p["bn3_beta"], p["bn3_mean"], p["bn3_var"])
    x2 = jnp.mean(y, axis=2)                                      # (N, C3)

    x_all = jnp.concatenate([x1, x2], axis=1)
    out = jnp.dot(x_all, p["fc_w"].T, precision=hp) + p["fc_b"]
    return out[:, 0]


def init_params(key, *, num_features, num_lstm_out,
                conv1_nf=16, conv2_nf=32, conv3_nf=16, reduction=16):
    ks = jax.random.split(key, 28)
    it = iter(range(28))

    def unif(k, shape, bound):
        return jax.random.uniform(k, shape, jnp.float32, -bound, bound)

    hdim, f = num_lstm_out, num_features
    p = {}
    lb = 1.0 / (hdim ** 0.5)
    p["lstm_w_ih"] = unif(ks[next(it)], (4 * hdim, f), lb)
    p["lstm_w_hh"] = unif(ks[next(it)], (4 * hdim, hdim), lb)
    p["lstm_b_ih"] = unif(ks[next(it)], (4 * hdim,), lb)
    p["lstm_b_hh"] = unif(ks[next(it)], (4 * hdim,), lb)

    def conv(cout, cin, k):
        bound = 1.0 / ((cin * k) ** 0.5)
        return (unif(ks[next(it)], (cout, cin, k), bound),
                unif(ks[next(it)], (cout,), bound))

    p["conv1_w"], p["conv1_b"] = conv(conv1_nf, f, 8)
    p["conv2_w"], p["conv2_b"] = conv(conv2_nf, conv1_nf, 5)
    p["conv3_w"], p["conv3_b"] = conv(conv3_nf, conv2_nf, 3)

    def bn(c):
        return (jax.random.uniform(ks[next(it)], (c,), jnp.float32, 0.5, 1.5),
                0.1 * jax.random.normal(ks[next(it)], (c,), jnp.float32),
                0.1 * jax.random.normal(ks[next(it)], (c,), jnp.float32),
                jax.random.uniform(ks[next(it)], (c,), jnp.float32, 0.5, 1.5))

    p["bn1_gamma"], p["bn1_beta"], p["bn1_mean"], p["bn1_var"] = bn(conv1_nf)
    p["bn2_gamma"], p["bn2_beta"], p["bn2_mean"], p["bn2_var"] = bn(conv2_nf)
    p["bn3_gamma"], p["bn3_beta"], p["bn3_mean"], p["bn3_var"] = bn(conv3_nf)

    p["se1_w1"] = unif(ks[next(it)], (conv1_nf // reduction, conv1_nf),
                       1.0 / conv1_nf ** 0.5)
    p["se1_w2"] = unif(ks[next(it)], (conv1_nf, conv1_nf // reduction),
                       1.0 / (conv1_nf // reduction) ** 0.5)
    p["se2_w1"] = unif(ks[next(it)], (conv2_nf // reduction, conv2_nf),
                       1.0 / conv2_nf ** 0.5)
    p["se2_w2"] = unif(ks[next(it)], (conv2_nf, conv2_nf // reduction),
                       1.0 / (conv2_nf // reduction) ** 0.5)

    fc_in = conv3_nf + hdim
    p["fc_w"] = unif(ks[next(it)], (1, fc_in), 1.0 / fc_in ** 0.5)
    p["fc_b"] = unif(ks[next(it)], (1,), 1.0 / fc_in ** 0.5)
    return p


if __name__ == "__main__":
    # Small config consistent with the module (conv kernels 8,5,3 need L >= 14).
    batch, max_seq_len, num_features = 2, 16, 4
    num_lstm_out = 128                       # module default; lane-dense on TPU

    key = jax.random.PRNGKey(0)
    k_x, k_p = jax.random.split(key)
    x = jax.random.normal(k_x, (batch, max_seq_len, num_features),
                          dtype=jnp.float32)
    seq_lens = jnp.array([max_seq_len, 12], dtype=jnp.int32)
    params = init_params(k_p, num_features=num_features,
                         num_lstm_out=num_lstm_out)

    out = regression_mlstm_fcn_forward(x, seq_lens, params)
    out = jax.block_until_ready(out)

    ref = reference_forward(x, seq_lens, params)
    assert out.shape == ref.shape == (batch,), (out.shape, ref.shape)
    assert bool(jnp.all(jnp.isfinite(out))), out
    assert jnp.allclose(out, ref, atol=2e-2, rtol=2e-2), (out, ref)

    print("KERNEL_OK")
</pallas_src>

<mosaic_0001>
module attributes {stable_mosaic.version = 11 : i64} {
  func.func @_lstm_kernel(%arg0: memref<16x2x4xf32, #tpu.memory_space<vmem>>, %arg1: memref<4x512xf32, #tpu.memory_space<vmem>>, %arg2: memref<128x512xf32, #tpu.memory_space<vmem>>, %arg3: memref<1x512xf32, #tpu.memory_space<vmem>>, %arg4: memref<16x2x128xf32, #tpu.memory_space<vmem>>, %arg5: memref<2x128xf32, #tpu.memory_space<vmem>>, %arg6: memref<2x128xf32, #tpu.memory_space<vmem>>) attributes {dimension_semantics = [], scalar_prefetch = 0 : i64, scratch_operands = 2 : i64, tpu.core_type = #tpu.core_type<tc>} {
    %cst = arith.constant 0.000000e+00 : f32
    %0 = vector.broadcast %cst : f32 to vector<2x128xf32>
    %c0 = arith.constant 0 : index
    %c0_0 = arith.constant 0 : index
    %1 = vector.load %arg5[%c0, %c0_0] : memref<2x128xf32, #tpu.memory_space<vmem>>, vector<2x128xf32>
    tpu.vector_store %arg5[%c0, %c0_0], %0 {strides = array<i32>} : memref<2x128xf32, #tpu.memory_space<vmem>>, vector<2x128xf32>,
    %cst_1 = arith.constant 0.000000e+00 : f32
    %2 = vector.broadcast %cst_1 : f32 to vector<2x128xf32>
    %c0_2 = arith.constant 0 : index
    %c0_3 = arith.constant 0 : index
    %3 = vector.load %arg6[%c0_2, %c0_3] : memref<2x128xf32, #tpu.memory_space<vmem>>, vector<2x128xf32>
    tpu.vector_store %arg6[%c0_2, %c0_3], %2 {strides = array<i32>} : memref<2x128xf32, #tpu.memory_space<vmem>>, vector<2x128xf32>,
    %c0_i32 = arith.constant 0 : i32
    %c16_i32 = arith.constant 16 : i32
    %4 = arith.addi %c0_i32, %c16_i32 : i32
    %c1_i32 = arith.constant 1 : i32
    scf.for %arg7 = %c0_i32 to %4 step %c1_i32  : i32 {
      %5 = arith.index_cast %arg7 : i32 to index
      %c0_5 = arith.constant 0 : index
      %c0_6 = arith.constant 0 : index
      %6 = vector.load %arg0[%5, %c0_5, %c0_6] : memref<16x2x4xf32, #tpu.memory_space<vmem>>, vector<1x2x4xf32>
      %7 = vector.shape_cast %6 : vector<1x2x4xf32> to vector<2x4xf32>
      %c0_7 = arith.constant 0 : index
      %c0_8 = arith.constant 0 : index
      %8 = vector.load %arg1[%c0_7, %c0_8] : memref<4x512xf32, #tpu.memory_space<vmem>>, vector<4x512xf32>
      %cst_9 = arith.constant dense<0.000000e+00> : vector<2x512xf32>
      %9 = tpu.matmul %7, %8, %cst_9 {dimension_numbers = #tpu.dot_dimension_numbers<[1], [0], [0], [1], [0, 0, 1, 1], [], []>} : vector<2x4xf32>, vector<4x512xf32>, vector<2x512xf32> -> vector<2x512xf32>
      %c0_10 = arith.constant 0 : index
      %c0_11 = arith.constant 0 : index
      %10 = vector.load %arg5[%c0_10, %c0_11] : memref<2x128xf32, #tpu.memory_space<vmem>>, vector<2x128xf32>
      %c0_12 = arith.constant 0 : index
      %c0_13 = arith.constant 0 : index
      %11 = vector.load %arg2[%c0_12, %c0_13] : memref<128x512xf32, #tpu.memory_space<vmem>>, vector<128x512xf32>
      %cst_14 = arith.constant dense<0.000000e+00> : vector<2x512xf32>
      %12 = tpu.matmul %10, %11, %cst_14 {dimension_numbers = #tpu.dot_dimension_numbers<[1], [0], [0], [1], [0, 0, 1, 1], [], []>} : vector<2x128xf32>, vector<128x512xf32>, vector<2x512xf32> -> vector<2x512xf32>
      %13 = arith.addf %9, %12 : vector<2x512xf32>
      %c0_15 = arith.constant 0 : index
      %c0_16 = arith.constant 0 : index
      %14 = vector.load %arg3[%c0_15, %c0_16] : memref<1x512xf32, #tpu.memory_space<vmem>>, vector<1x512xf32>
      %15 = vector.broadcast %14 : vector<1x512xf32> to vector<2x512xf32>
      %16 = arith.addf %13, %15 : vector<2x512xf32>
      %17 = vector.extract_strided_slice %16 {offsets = [0, 0], sizes = [2, 128], strides = [1, 1]} : vector<2x512xf32> to vector<2x128xf32>
      %cst_17 = arith.constant 0.000000e+00 : f32
      %18 = vector.broadcast %cst_17 : f32 to vector<2x128xf32>
      %19 = arith.subf %18, %17 : vector<2x128xf32>
      %20 = math.exp %19 : vector<2x128xf32>
      %cst_18 = arith.constant 1.000000e+00 : f32
      %21 = vector.broadcast %cst_18 : f32 to vector<2x128xf32>
      %22 = arith.addf %21, %20 : vector<2x128xf32>
      %cst_19 = arith.constant 1.000000e+00 : f32
      %23 = vector.broadcast %cst_19 : f32 to vector<2x128xf32>
      %24 = arith.divf %23, %22 : vector<2x128xf32>
      %25 = vector.extract_strided_slice %16 {offsets = [0, 128], sizes = [2, 128], strides = [1, 1]} : vector<2x512xf32> to vector<2x128xf32>
      %cst_20 = arith.constant 0.000000e+00 : f32
      %26 = vector.broadcast %cst_20 : f32 to vector<2x128xf32>
      %27 = arith.subf %26, %25 : vector<2x128xf32>
      %28 = math.exp %27 : vector<2x128xf32>
      %cst_21 = arith.constant 1.000000e+00 : f32
      %29 = vector.broadcast %cst_21 : f32 to vector<2x128xf32>
      %30 = arith.addf %29, %28 : vector<2x128xf32>
      %cst_22 = arith.constant 1.000000e+00 : f32
      %31 = vector.broadcast %cst_22 : f32 to vector<2x128xf32>
      %32 = arith.divf %31, %30 : vector<2x128xf32>
      %33 = vector.extract_strided_slice %16 {offsets = [0, 256], sizes = [2, 128], strides = [1, 1]} : vector<2x512xf32> to vector<2x128xf32>
      %34 = math.tanh %33 : vector<2x128xf32>
      %35 = vector.extract_strided_slice %16 {offsets = [0, 384], sizes = [2, 128], strides = [1, 1]} : vector<2x512xf32> to vector<2x128xf32>
      %cst_23 = arith.constant 0.000000e+00 : f32
      %36 = vector.broadcast %cst_23 : f32 to vector<2x128xf32>
      %37 = arith.subf %36, %35 : vector<2x128xf32>
      %38 = math.exp %37 : vector<2x128xf32>
      %cst_24 = arith.constant 1.000000e+00 : f32
      %39 = vector.broadcast %cst_24 : f32 to vector<2x128xf32>
      %40 = arith.addf %39, %38 : vector<2x128xf32>
      %cst_25 = arith.constant 1.000000e+00 : f32
      %41 = vector.broadcast %cst_25 : f32 to vector<2x128xf32>
      %42 = arith.divf %41, %40 : vector<2x128xf32>
      %c0_26 = arith.constant 0 : index
      %c0_27 = arith.constant 0 : index
      %43 = vector.load %arg6[%c0_26, %c0_27] : memref<2x128xf32, #tpu.memory_space<vmem>>, vector<2x128xf32>
      %44 = arith.mulf %32, %43 : vector<2x128xf32>
      %45 = arith.mulf %24, %34 : vector<2x128xf32>
      %46 = arith.addf %44, %45 : vector<2x128xf32>
      %47 = math.tanh %46 : vector<2x128xf32>
      %48 = arith.mulf %42, %47 : vector<2x128xf32>
      %c0_28 = arith.constant 0 : index
      %c0_29 = arith.constant 0 : index
      %49 = vector.load %arg6[%c0_28, %c0_29] : memref<2x128xf32, #tpu.memory_space<vmem>>, vector<2x128xf32>
      tpu.vector_store %arg6[%c0_28, %c0_29], %46 {strides = array<i32>} : memref<2x128xf32, #tpu.memory_space<vmem>>, vector<2x128xf32>,
      %c0_30 = arith.constant 0 : index
      %c0_31 = arith.constant 0 : index
      %50 = vector.load %arg5[%c0_30, %c0_31] : memref<2x128xf32, #tpu.memory_space<vmem>>, vector<2x128xf32>
      tpu.vector_store %arg5[%c0_30, %c0_31], %48 {strides = array<i32>} : memref<2x128xf32, #tpu.memory_space<vmem>>, vector<2x128xf32>,
      %51 = arith.index_cast %arg7 : i32 to index
      %c0_32 = arith.constant 0 : index
      %c0_33 = arith.constant 0 : index
      %52 = vector.load %arg4[%51, %c0_32, %c0_33] : memref<16x2x128xf32, #tpu.memory_space<vmem>>, vector<1x2x128xf32>
      %53 = vector.shape_cast %52 : vector<1x2x128xf32> to vector<2x128xf32>
      %54 = vector.shape_cast %48 : vector<2x128xf32> to vector<1x2x128xf32>
      tpu.vector_store %arg4[%51, %c0_32, %c0_33], %54 {strides = array<i32>} : memref<16x2x128xf32, #tpu.memory_space<vmem>>, vector<1x2x128xf32>,
    }
    %c16_i32_4 = arith.constant 16 : i32
    return
  }
}

</mosaic_0001>

<llo_original>
// kernel: tpu_custom_call.1
$region0: #{tpu_custom_call.1}
  #allocation0 [shape = 'u32[]', space=smem, size = 0x4, offset = 0x4, fixed_abs, tag = 'smem constant byte address 0x4 - core index']
  #allocation1 [shape = 'u32[144,128]{1,0:T(1,128)}', space=vmem, size = 0x12000, scoped, tag = 'internal scratch']
  #allocation2 [shape = 'f32[2,128]{1,0:T(2,128)}', space=vmem, size = 0x400, scoped, tag = 'scratch operand']
  #allocation3 [shape = 'f32[2,128]{1,0:T(2,128)}', space=vmem, size = 0x400, scoped, tag = 'scratch operand']
  %s0 = inlined_call_operand.vmem [shape: f32[16,2,4], index: 0, kind: input, shape index: {}]
  %s1 = inlined_call_operand.vmem [shape: f32[4,512], index: 1, kind: input, shape index: {}]
  %s2 = inlined_call_operand.hbm [shape: f32[128,512], index: 2, kind: input, shape index: {}]
  %s3 = inlined_call_operand.vmem [shape: f32[1,512], index: 3, kind: input, shape index: {}]
  %s4 = inlined_call_operand.hbm [shape: f32[16,2,128], index: 4, kind: output, shape index: {}]
  %s5 = sld [smem:[#allocation0]]
  $region37: #{tpu_custom_call.1} parent=0
    _
  %s7 = ssub.s32 1, %s5
  %s8 = scalar_select 0, %s7, %s5
  $region1: #{tpu_custom_call.1} parent=0
    #allocation4 [shape = 'u8[262144]{0}', space=vmem, size = 0x40000, scoped, tag = 'input window, operand 2, single buffered']
    #allocation5 [shape = 's32[1]{0}', space=sflag, size = 0x4, scoped, tag = 'scoped memory for tpu_custom_call.1']
    #allocation6 [shape = 's32[1]{0}', space=sflag, size = 0x4, scoped, tag = 'scoped memory for tpu_custom_call.1']
    #allocation7 [shape = 'u8[16384]{0}', space=vmem, size = 0x4000, scoped, tag = 'output window, operand 0, single buffered']
    %9 = vsyncpa [#allocation5], 0
    %10 = vsyncpa [#allocation6], 0
    // Predicated region
    $region2: #{tpu_custom_call.1} parent=1 // pred_check
      _
    $region3: #{tpu_custom_call.1} parent=1 // pred_check_branch
      %12 = sbr.rel (0) target = $region5
    $region4: #{tpu_custom_call.1} parent=1 // pred_region
      _
    $region5: #{tpu_custom_call.1} parent=1 // pred_fallthru
      _
    // Predicated region
    $region6: #{tpu_custom_call.1} parent=1 // pred_check
      _
    $region7: #{tpu_custom_call.1} parent=1 // pred_check_branch
      %14 = sbr.rel (0) target = $region9
    $region8: #{tpu_custom_call.1} parent=1 // pred_region
      _
    $region9: #{tpu_custom_call.1} parent=1 // pred_fallthru
      _
    // Predicated region
    $region10: #{tpu_custom_call.1} parent=1 // pred_check
      _
    $region11: #{tpu_custom_call.1} parent=1 // pred_check_branch
      %16 = sbr.rel (0) target = $region13
    $region12: #{tpu_custom_call.1} parent=1 // pred_region
      %s18 = ssub.s32 8192, 8192
      %19 = vsyncadd [#allocation5], %s18
      %s20 = sshll.u32 [#allocation4], 4
      %s21 = int_to_ptr.vmem [resolvable:$true] %s20
      %26 = dma.hbm_to_vmem [thread:$0]  %s2, 8192, %s21, [#allocation5], 512, 512, 32
    $region13: #{tpu_custom_call.1} parent=1 // pred_fallthru
      _
    // Predicated region
    $region14: #{tpu_custom_call.1} parent=1 // pred_check
      _
    $region15: #{tpu_custom_call.1} parent=1 // pred_check_branch
      %28 = sbr.rel (0) target = $region17
    $region16: #{tpu_custom_call.1} parent=1 // pred_region
      _
    $region17: #{tpu_custom_call.1} parent=1 // pred_fallthru
      _
    // Predicated region
    $region18: #{tpu_custom_call.1} parent=1 // pred_check
      _
    $region19: #{tpu_custom_call.1} parent=1 // pred_check_branch
      %30 = sbr.rel (0) target = $region21
    $region20: #{tpu_custom_call.1} parent=1 // pred_region
      %31 = dma.done [#allocation5], 8192
    $region21: #{tpu_custom_call.1} parent=1 // pred_fallthru
      _
    %32 = vst [vmem:[#allocation2] sm:$0x3] 0.0
    %33 = vst [vmem:[#allocation3] sm:$0x3] 0.0
    loop: start=0, step=1, limit=16
    $region22: #{tpu_custom_call.1} parent=1 // loop_pre_header
      _
    $region23: #{tpu_custom_call.1} parent=1 // loop_header
      %s35 = sphi 0, %s39
      %p36 = scmp.ge.s32.totalorder %s35, 16
    $region24: #{tpu_custom_call.1} parent=1 // loop_header_branch
      %38 = sbr.rel (%p36) target = $region28
    $region25: #{tpu_custom_call.1} parent=1 // loop_body
      %s40 = smul.u32 %s35, 2
      %s41 = scalar_lea.vmem %s0, %s40
      %v42 = vld [vmem:[%s41] sm:$0x3]
      %v43 = vld [vmem:[%s1] sm:$0xff]
      %v44 = vld [vmem:[%s1 + $0x8] sm:$0xff]
      %v45 = vld [vmem:[#allocation2] sm:$0x3]
      %v46 = vld [vmem:[#allocation4] sm:$0xff]
      %v47 = vld [vmem:[#allocation4 + $0x8] sm:$0xff]
      %v48 = vld [vmem:[#allocation4 + $0x10] sm:$0xff]
      %v49 = vld [vmem:[#allocation4 + $0x18] sm:$0xff]
      %v50 = vld [vmem:[#allocation4 + $0x20] sm:$0xff]
      %v51 = vld [vmem:[#allocation4 + $0x28] sm:$0xff]
      %v52 = vld [vmem:[#allocation4 + $0x30] sm:$0xff]
      %v53 = vld [vmem:[#allocation4 + $0x38] sm:$0xff]
      %v54 = vld [vmem:[#allocation4 + $0x40] sm:$0xff]
      %v55 = vld [vmem:[#allocation4 + $0x48] sm:$0xff]
      %v56 = vld [vmem:[#allocation4 + $0x50] sm:$0xff]
      %v57 = vld [vmem:[#allocation4 + $0x58] sm:$0xff]
      %v58 = vld [vmem:[#allocation4 + $0x60] sm:$0xff]
      %v59 = vld [vmem:[#allocation4 + $0x68] sm:$0xff]
      %v60 = vld [vmem:[#allocation4 + $0x70] sm:$0xff]
      %v61 = vld [vmem:[#allocation4 + $0x78] sm:$0xff]
      %v62 = vld [vmem:[#allocation4 + $0x80] sm:$0xff]
      %v63 = vld [vmem:[#allocation4 + $0x88] sm:$0xff]
      %v64 = vld [vmem:[#allocation4 + $0x90] sm:$0xff]
      %v65 = vld [vmem:[#allocation4 + $0x98] sm:$0xff]
      %v66 = vld [vmem:[#allocation4 + $0xa0] sm:$0xff]
      %v67 = vld [vmem:[#allocation4 + $0xa8] sm:$0xff]
      %v68 = vld [vmem:[#allocation4 + $0xb0] sm:$0xff]
      %v69 = vld [vmem:[#allocation4 + $0xb8] sm:$0xff]
      %v70 = vld [vmem:[#allocation4 + $0xc0] sm:$0xff]
      %v71 = vld [vmem:[#allocation4 + $0xc8] sm:$0xff]
      %v72 = vld [vmem:[#allocation4 + $0xd0] sm:$0xff]
      %v73 = vld [vmem:[#allocation4 + $0xd8] sm:$0xff]
      %v74 = vld [vmem:[#allocation4 + $0xe0] sm:$0xff]
      %v75 = vld [vmem:[#allocation4 + $0xe8] sm:$0xff]
      %v76 = vld [vmem:[#allocation4 + $0xf0] sm:$0xff]
      %v77 = vld [vmem:[#allocation4 + $0xf8] sm:$0xff]
      %v78 = vld [vmem:[#allocation4 + $0x100] sm:$0xff]
      %v79 = vld [vmem:[#allocation4 + $0x108] sm:$0xff]
      %v80 = vld [vmem:[#allocation4 + $0x110] sm:$0xff]
      %v81 = vld [vmem:[#allocation4 + $0x118] sm:$0xff]
      %v82 = vld [vmem:[#allocation4 + $0x120] sm:$0xff]
      %v83 = vld [vmem:[#allocation4 + $0x128] sm:$0xff]
      %v84 = vld [vmem:[#allocation4 + $0x130] sm:$0xff]
      %v85 = vld [vmem:[#allocation4 + $0x138] sm:$0xff]
      %v86 = vld [vmem:[#allocation4 + $0x140] sm:$0xff]
      %v87 = vld [vmem:[#allocation4 + $0x148] sm:$0xff]
      %v88 = vld [vmem:[#allocation4 + $0x150] sm:$0xff]
      %v89 = vld [vmem:[#allocation4 + $0x158] sm:$0xff]
      %v90 = vld [vmem:[#allocation4 + $0x160] sm:$0xff]
      %v91 = vld [vmem:[#allocation4 + $0x168] sm:$0xff]
      %v92 = vld [vmem:[#allocation4 + $0x170] sm:$0xff]
      %v93 = vld [vmem:[#allocation4 + $0x178] sm:$0xff]
      %v94 = vld [vmem:[#allocation4 + $0x180] sm:$0xff]
      %v95 = vld [vmem:[#allocation4 + $0x188] sm:$0xff]
      %v96 = vld [vmem:[#allocation4 + $0x190] sm:$0xff]
      %v97 = vld [vmem:[#allocation4 + $0x198] sm:$0xff]
      %v98 = vld [vmem:[#allocation4 + $0x1a0] sm:$0xff]
      %v99 = vld [vmem:[#allocation4 + $0x1a8] sm:$0xff]
      %v100 = vld [vmem:[#allocation4 + $0x1b0] sm:$0xff]
      %v101 = vld [vmem:[#allocation4 + $0x1b8] sm:$0xff]
      %v102 = vld [vmem:[#allocation4 + $0x1c0] sm:$0xff]
      %v103 = vld [vmem:[#allocation4 + $0x1c8] sm:$0xff]
      %v104 = vld [vmem:[#allocation4 + $0x1d0] sm:$0xff]
      %v105 = vld [vmem:[#allocation4 + $0x1d8] sm:$0xff]
      %v106 = vld [vmem:[#allocation4 + $0x1e0] sm:$0xff]
      %v107 = vld [vmem:[#allocation4 + $0x1e8] sm:$0xff]
      %v108 = vld [vmem:[#allocation4 + $0x1f0] sm:$0xff]
      %v109 = vld [vmem:[#allocation4 + $0x1f8] sm:$0xff]
      %110 = vmatprep.subr.mxu0 %v47
      %111 = vmatpush1.msra.mxu0 %v46
      %112 = vmatprep.subr.mxu0 %v51
      %113 = vmatpush1.msra.mxu0 %v50
      %114 = vmatprep.subr.mxu0 %v55
      %115 = vmatpush1.msra.mxu0 %v54
      %116 = vmatprep.subr.mxu0 %v59
      %117 = vmatpush1.msra.mxu0 %v58
      %118 = vmatprep.subr.mxu0 %v63
      %119 = vmatpush1.msra.mxu0 %v62
      %120 = vmatprep.subr.mxu0 %v67
      %121 = vmatpush1.msra.mxu0 %v66
      %122 = vmatprep.subr.mxu0 %v71
      %123 = vmatpush1.msra.mxu0 %v70
      %124 = vmatprep.subr.mxu0 %v75
      %125 = vmatpush1.msra.mxu0 %v74
      %126 = vmatprep.subr.mxu0 %v79
      %127 = vmatpush1.msra.mxu0 %v78
      %128 = vmatprep.subr.mxu0 %v83
      %129 = vmatpush1.msra.mxu0 %v82
      %130 = vmatprep.subr.mxu0 %v87
      %131 = vmatpush1.msra.mxu0 %v86
      %132 = vmatprep.subr.mxu0 %v91
      %133 = vmatpush1.msra.mxu0 %v90
      %134 = vmatprep.subr.mxu0 %v95
      %135 = vmatpush1.msra.mxu0 %v94
      %136 = vmatprep.subr.mxu0 %v99
      %137 = vmatpush1.msra.mxu0 %v98
      %138 = vmatprep.subr.mxu0 %v103
      %139 = vmatpush1.msra.mxu0 %v102
      %140 = vmatprep.subr.mxu0 %v107
      %141 = vmatpush1.msra.mxu0 %v106
      %142 = vmatprep.subr.mxu0 0.0
      %143 = vmatpush1.msra.mxu0 0.0
      %144 = vmatprep.subr.mxu0 0.0
      %145 = vmatpush1.msra.mxu0 0.0
      %146 = vmatprep.subr.mxu0 0.0
      %147 = vmatpush1.msra.mxu0 0.0
      %148 = vmatprep.subr.mxu0 0.0
      %149 = vmatpush1.msra.mxu0 0.0
      %150 = vmatprep.subr.mxu0 0.0
      %151 = vmatpush1.msra.mxu0 0.0
      %152 = vmatprep.subr.mxu0 0.0
      %153 = vmatpush1.msra.mxu0 0.0
      %154 = vmatprep.subr.mxu0 0.0
      %155 = vmatpush1.msra.mxu0 0.0
      %156 = vmatprep.subr.mxu0 0.0
      %157 = vmatpush1.msra.mxu0 0.0
      %158 = vmatprep.subr.mxu0 0.0
      %159 = vmatpush1.msra.mxu0 0.0
      %160 = vmatprep.subr.mxu0 0.0
      %161 = vmatpush1.msra.mxu0 0.0
      %162 = vmatprep.subr.mxu0 0.0
      %163 = vmatpush1.msra.mxu0 0.0
      %164 = vmatprep.subr.mxu0 0.0
      %165 = vmatpush1.msra.mxu0 0.0
      %166 = vmatprep.subr.mxu0 0.0
      %167 = vmatpush1.msra.mxu0 0.0
      %168 = vmatprep.subr.mxu0 0.0
      %169 = vmatpush1.msra.mxu0 0.0
      %170 = vmatprep.subr.mxu0 0.0
      %171 = vmatpush1.msra.mxu0 0.0
      %172 = vmatprep.subr.mxu0 0.0
      %173 = vmatpush1.msra.mxu0 0.0
      %174 = vmatprep.mubr.f32.mxu0 0.0
      %175 = vmatmul.mubr.f32.gmra.mrb[0].mxu0 %v45
      %v176 = vpop.f32.mrb[0].mxu0
      %v177 = vadd.f32 0.0, %v176
      %v178 = vpop.f32.mrb[0].mxu0
      %v179 = vadd.f32 0.0, %v178
      %180 = vdwg.mxu0
      %181 = vmatprep.subr.mxu0 %v49
      %182 = vmatpush1.msra.mxu0 %v48
      %183 = vmatprep.subr.mxu0 %v53
      %184 = vmatpush1.msra.mxu0 %v52
      %185 = vmatprep.subr.mxu0 %v57
      %186 = vmatpush1.msra.mxu0 %v56
      %187 = vmatprep.subr.mxu0 %v61
      %188 = vmatpush1.msra.mxu0 %v60
      %189 = vmatprep.subr.mxu0 %v65
      %190 = vmatpush1.msra.mxu0 %v64
      %191 = vmatprep.subr.mxu0 %v69
      %192 = vmatpush1.msra.mxu0 %v68
      %193 = vmatprep.subr.mxu0 %v73
      %194 = vmatpush1.msra.mxu0 %v72
      %195 = vmatprep.subr.mxu0 %v77
      %196 = vmatpush1.msra.mxu0 %v76
      %197 = vmatprep.subr.mxu0 %v81
      %198 = vmatpush1.msra.mxu0 %v80
      %199 = vmatprep.subr.mxu0 %v85
      %200 = vmatpush1.msra.mxu0 %v84
      %201 = vmatprep.subr.mxu0 %v89
      %202 = vmatpush1.msra.mxu0 %v88
      %203 = vmatprep.subr.mxu0 %v93
      %204 = vmatpush1.msra.mxu0 %v92
      %205 = vmatprep.subr.mxu0 %v97
      %206 = vmatpush1.msra.mxu0 %v96
      %207 = vmatprep.subr.mxu0 %v101
      %208 = vmatpush1.msra.mxu0 %v100
      %209 = vmatprep.subr.mxu0 %v105
      %210 = vmatpush1.msra.mxu0 %v104
      %211 = vmatprep.subr.mxu0 %v109
      %212 = vmatpush1.msra.mxu0 %v108
      %213 = vmatprep.subr.mxu0 0.0
      %214 = vmatpush1.msra.mxu0 0.0
      %215 = vmatprep.subr.mxu0 0.0
      %216 = vmatpush1.msra.mxu0 0.0
      %217 = vmatprep.subr.mxu0 0.0
      %218 = vmatpush1.msra.mxu0 0.0
      %219 = vmatprep.subr.mxu0 0.0
      %220 = vmatpush1.msra.mxu0 0.0
      %221 = vmatprep.subr.mxu0 0.0
      %222 = vmatpush1.msra.mxu0 0.0
      %223 = vmatprep.subr.mxu0 0.0
      %224 = vmatpush1.msra.mxu0 0.0
      %225 = vmatprep.subr.mxu0 0.0
      %226 = vmatpush1.msra.mxu0 0.0
      %227 = vmatprep.subr.mxu0 0.0
      %228 = vmatpush1.msra.mxu0 0.0
      %229 = vmatprep.subr.mxu0 0.0
      %230 = vmatpush1.msra.mxu0 0.0
      %231 = vmatprep.subr.mxu0 0.0
      %232 = vmatpush1.msra.mxu0 0.0
      %233 = vmatprep.subr.mxu0 0.0
      %234 = vmatpush1.msra.mxu0 0.0
      %235 = vmatprep.subr.mxu0 0.0
      %236 = vmatpush1.msra.mxu0 0.0
      %237 = vmatprep.subr.mxu0 0.0
      %238 = vmatpush1.msra.mxu0 0.0
      %239 = vmatprep.subr.mxu0 0.0
      %240 = vmatpush1.msra.mxu0 0.0
      %241 = vmatprep.subr.mxu0 0.0
      %242 = vmatpush1.msra.mxu0 0.0
      %243 = vmatprep.subr.mxu0 0.0
      %244 = vmatpush1.msra.mxu0 0.0
      %245 = vmatprep.mubr.f32.mxu0 0.0
      %246 = vmatmul.mubr.f32.gmra.mrb[0].mxu0 %v45
      %v247 = vpop.f32.mrb[0].mxu0
      %v248 = vadd.f32 0.0, %v247
      %v249 = vpop.f32.mrb[0].mxu0
      %v250 = vadd.f32 0.0, %v249
      %251 = vdwg.mxu0
      %v254 = vcombine.high %v43, %v43
      %v255 = vcombine.high %v44, %v44
      %vm256 = vcmask 31744
      %v258 = vsel %vm256, %v42, 0
      %vm260 = vcmask 1043456
      %v261 = vsel %vm260, %v43, 0
      %v263 = vsel %vm260, %v254, 0
      %v265 = vsel %vm260, %v44, 0
      %v267 = vsel %vm260, %v255, 0
      %269 = vmatprep.subr.mxu0 %v263
      %270 = vmatpush1.msra.mxu0 %v261
      %271 = vmatprep.subr.mxu0 0.0
      %272 = vmatpush1.msra.mxu0 0.0
      %273 = vmatprep.subr.mxu0 0.0
      %274 = vmatpush1.msra.mxu0 0.0
      %275 = vmatprep.subr.mxu0 0.0
      %276 = vmatpush1.msra.mxu0 0.0
      %277 = vmatprep.subr.mxu0 0.0
      %278 = vmatpush1.msra.mxu0 0.0
      %279 = vmatprep.subr.mxu0 0.0
      %280 = vmatpush1.msra.mxu0 0.0
      %281 = vmatprep.subr.mxu0 0.0
      %282 = vmatpush1.msra.mxu0 0.0
      %283 = vmatprep.subr.mxu0 0.0
      %284 = vmatpush1.msra.mxu0 0.0
      %285 = vmatprep.subr.mxu0 0.0
      %286 = vmatpush1.msra.mxu0 0.0
      %287 = vmatprep.subr.mxu0 0.0
      %288 = vmatpush1.msra.mxu0 0.0
      %289 = vmatprep.subr.mxu0 0.0
      %290 = vmatpush1.msra.mxu0 0.0
      %291 = vmatprep.subr.mxu0 0.0
      %292 = vmatpush1.msra.mxu0 0.0
      %293 = vmatprep.subr.mxu0 0.0
      %294 = vmatpush1.msra.mxu0 0.0
      %295 = vmatprep.subr.mxu0 0.0
      %296 = vmatpush1.msra.mxu0 0.0
      %297 = vmatprep.subr.mxu0 0.0
      %298 = vmatpush1.msra.mxu0 0.0
      %299 = vmatprep.subr.mxu0 0.0
      %300 = vmatpush1.msra.mxu0 0.0
      %301 = vmatprep.subr.mxu0 0.0
      %302 = vmatpush1.msra.mxu0 0.0
      %303 = vmatprep.subr.mxu0 0.0
      %304 = vmatpush1.msra.mxu0 0.0
      %305 = vmatprep.subr.mxu0 0.0
      %306 = vmatpush1.msra.mxu0 0.0
      %307 = vmatprep.subr.mxu0 0.0
      %308 = vmatpush1.msra.mxu0 0.0
      %309 = vmatprep.subr.mxu0 0.0
      %310 = vmatpush1.msra.mxu0 0.0
      %311 = vmatprep.subr.mxu0 0.0
      %312 = vmatpush1.msra.mxu0 0.0
      %313 = vmatprep.subr.mxu0 0.0
      %314 = vmatpush1.msra.mxu0 0.0
      %315 = vmatprep.subr.mxu0 0.0
      %316 = vmatpush1.msra.mxu0 0.0
      %317 = vmatprep.subr.mxu0 0.0
      %318 = vmatpush1.msra.mxu0 0.0
      %319 = vmatprep.subr.mxu0 0.0
      %320 = vmatpush1.msra.mxu0 0.0
      %321 = vmatprep.subr.mxu0 0.0
      %322 = vmatpush1.msra.mxu0 0.0
      %323 = vmatprep.subr.mxu0 0.0
      %324 = vmatpush1.msra.mxu0 0.0
      %325 = vmatprep.subr.mxu0 0.0
      %326 = vmatpush1.msra.mxu0 0.0
      %327 = vmatprep.subr.mxu0 0.0
      %328 = vmatpush1.msra.mxu0 0.0
      %329 = vmatprep.subr.mxu0 0.0
      %330 = vmatpush1.msra.mxu0 0.0
      %331 = vmatprep.subr.mxu0 0.0
      %332 = vmatpush1.msra.mxu0 0.0
      %333 = vmatprep.mubr.f32.mxu0 0.0
      %334 = vmatmul.mubr.f32.gmra.mrb[0].mxu0 %v258
      %v335 = vpop.f32.mrb[0].mxu0
      %v336 = vadd.f32 %v177, %v335
      %v337 = vpop.f32.mrb[0].mxu0
      %v338 = vadd.f32 %v179, %v337
      %339 = vdwg.mxu0
      %340 = vmatprep.subr.mxu0 %v267
      %341 = vmatpush1.msra.mxu0 %v265
      %342 = vmatprep.subr.mxu0 0.0
      %343 = vmatpush1.msra.mxu0 0.0
      %344 = vmatprep.subr.mxu0 0.0
      %345 = vmatpush1.msra.mxu0 0.0
      %346 = vmatprep.subr.mxu0 0.0
      %347 = vmatpush1.msra.mxu0 0.0
      %348 = vmatprep.subr.mxu0 0.0
      %349 = vmatpush1.msra.mxu0 0.0
      %350 = vmatprep.subr.mxu0 0.0
      %351 = vmatpush1.msra.mxu0 0.0
      %352 = vmatprep.subr.mxu0 0.0
      %353 = vmatpush1.msra.mxu0 0.0
      %354 = vmatprep.subr.mxu0 0.0
      %355 = vmatpush1.msra.mxu0 0.0
      %356 = vmatprep.subr.mxu0 0.0
      %357 = vmatpush1.msra.mxu0 0.0
      %358 = vmatprep.subr.mxu0 0.0
      %359 = vmatpush1.msra.mxu0 0.0
      %360 = vmatprep.subr.mxu0 0.0
      %361 = vmatpush1.msra.mxu0 0.0
      %362 = vmatprep.subr.mxu0 0.0
      %363 = vmatpush1.msra.mxu0 0.0
      %364 = vmatprep.subr.mxu0 0.0
      %365 = vmatpush1.msra.mxu0 0.0
      %366 = vmatprep.subr.mxu0 0.0
      %367 = vmatpush1.msra.mxu0 0.0
      %368 = vmatprep.subr.mxu0 0.0
      %369 = vmatpush1.msra.mxu0 0.0
      %370 = vmatprep.subr.mxu0 0.0
      %371 = vmatpush1.msra.mxu0 0.0
      %372 = vmatprep.subr.mxu0 0.0
      %373 = vmatpush1.msra.mxu0 0.0
      %374 = vmatprep.subr.mxu0 0.0
      %375 = vmatpush1.msra.mxu0 0.0
      %376 = vmatprep.subr.mxu0 0.0
      %377 = vmatpush1.msra.mxu0 0.0
      %378 = vmatprep.subr.mxu0 0.0
      %379 = vmatpush1.msra.mxu0 0.0
      %380 = vmatprep.subr.mxu0 0.0
      %381 = vmatpush1.msra.mxu0 0.0
      %382 = vmatprep.subr.mxu0 0.0
      %383 = vmatpush1.msra.mxu0 0.0
      %384 = vmatprep.subr.mxu0 0.0
      %385 = vmatpush1.msra.mxu0 0.0
      %386 = vmatprep.subr.mxu0 0.0
      %387 = vmatpush1.msra.mxu0 0.0
      %388 = vmatprep.subr.mxu0 0.0
      %389 = vmatpush1.msra.mxu0 0.0
      %390 = vmatprep.subr.mxu0 0.0
      %391 = vmatpush1.msra.mxu0 0.0
      %392 = vmatprep.subr.mxu0 0.0
      %393 = vmatpush1.msra.mxu0 0.0
      %394 = vmatprep.subr.mxu0 0.0
      %395 = vmatpush1.msra.mxu0 0.0
      %396 = vmatprep.subr.mxu0 0.0
      %397 = vmatpush1.msra.mxu0 0.0
      %398 = vmatprep.subr.mxu0 0.0
      %399 = vmatpush1.msra.mxu0 0.0
      %400 = vmatprep.subr.mxu0 0.0
      %401 = vmatpush1.msra.mxu0 0.0
      %402 = vmatprep.subr.mxu0 0.0
      %403 = vmatpush1.msra.mxu0 0.0
      %404 = vmatprep.mubr.f32.mxu0 0.0
      %405 = vmatmul.mubr.f32.gmra.mrb[0].mxu0 %v258
      %v406 = vpop.f32.mrb[0].mxu0
      %v407 = vadd.f32 %v248, %v406
      %v408 = vpop.f32.mrb[0].mxu0
      %v409 = vadd.f32 %v250, %v408
      %410 = vdwg.mxu0
      %v411 = vld [vmem:[%s3] sm:$0xf]
      %v413 = vlaneseq
      %v414 = vshrl.u32 %v413, 7
      %v415 = vsub.s32 0, %v414
      %v416 = vrot.slane %v411, %v415
      %v417 = vlaneseq
      %v418 = vshrl.u32 %v417, 7
      %v419 = vsub.s32 1, %v418
      %v420 = vrot.slane %v411, %v419
      %v421 = vlaneseq
      %v422 = vshrl.u32 %v421, 7
      %v423 = vsub.s32 2, %v422
      %v424 = vrot.slane %v411, %v423
      %v425 = vlaneseq
      %v426 = vshrl.u32 %v425, 7
      %v427 = vsub.s32 3, %v426
      %v428 = vrot.slane %v411, %v427
      %v433 = vadd.f32 %v336, %v416
      %v434 = vadd.f32 %v338, %v420
      %v435 = vadd.f32 %v407, %v424
      %v436 = vadd.f32 %v409, %v428
      %v437 = vsub.f32 0.0, %v433
      %v438 = vmul.f32 %v437, 1.442695
      %v439 = vpow.pop %v438
      %v440 = vadd.f32 %v439, 1.0
      %v441 = vrcp.pop %v440
      %v442 = vmul.f32 1.0, %v441
      %v443 = vsub.f32 0.0, %v434
      %v444 = vmul.f32 %v443, 1.442695
      %v445 = vpow.pop %v444
      %v446 = vadd.f32 %v445, 1.0
      %v447 = vrcp.pop %v446
      %v448 = vmul.f32 1.0, %v447
      %v449 = vtanh.pop %v435
      %v450 = vsub.f32 0.0, %v436
      %v451 = vmul.f32 %v450, 1.442695
      %v452 = vpow.pop %v451
      %v453 = vadd.f32 %v452, 1.0
      %v454 = vrcp.pop %v453
      %v455 = vmul.f32 1.0, %v454
      %v456 = vld [vmem:[#allocation3] sm:$0x3]
      %v457 = vmul.f32 %v448, %v456
      %v458 = vmul.f32 %v442, %v449
      %v459 = vadd.f32 %v457, %v458
      %v460 = vtanh.pop %v459
      %v461 = vmul.f32 %v455, %v460
      %462 = vst [vmem:[#allocation3] sm:$0x3] %v459
      %463 = vst [vmem:[#allocation2] sm:$0x3] %v461
      %s464 = scalar_lea.vmem [#allocation7], %s40
      %465 = vst [vmem:[%s464] sm:$0x3] %v461
    $region26: #{tpu_custom_call.1} parent=1 // loop_footer
      %s39 = sadd.s32 1, %s35
    $region27: #{tpu_custom_call.1} parent=1 // loop_footer_branch
      %34 = sbr.rel target = $region23
    $region28: #{tpu_custom_call.1} parent=1 // loop_exit
      _
    // Predicated region
    $region29: #{tpu_custom_call.1} parent=1 // pred_check
      _
    $region30: #{tpu_custom_call.1} parent=1 // pred_check_branch
      %467 = sbr.rel (0) target = $region32
    $region31: #{tpu_custom_call.1} parent=1 // pred_region
      %s469 = ssub.s32 512, 512
      %470 = vsyncadd [#allocation6], %s469
      %s471 = sshll.u32 [#allocation7], 4
      %s472 = int_to_ptr.vmem [resolvable:$true] %s471
      %477 = dma.vmem_to_hbm [thread:$0]  %s472, 512, %s4, [#allocation6], 32, 32, 2
    $region32: #{tpu_custom_call.1} parent=1 // pred_fallthru
      _
    // Predicated region
    $region33: #{tpu_custom_call.1} parent=1 // pred_check
      _
    $region34: #{tpu_custom_call.1} parent=1 // pred_check_branch
      %479 = sbr.rel (0) target = $region36
    $region35: #{tpu_custom_call.1} parent=1 // pred_region
      %480 = dma.done [#allocation6], 512
    $region36: #{tpu_custom_call.1} parent=1 // pred_fallthru
      _
    %481 = vsyncpa [#allocation5], 1
    %482 = vsyncpa [#allocation6], 1

</llo_original>
